<compile_context>
chip_gen: v5e
topology: v5e:2x2
jax: 0.10.0
libtpu: 0.0.40
codegen_flags: <defaults>
</compile_context>

<pallas_src>
import functools

import jax
import jax.numpy as jnp
from jax.experimental import pallas as pl
from jax.experimental.pallas import tpu as pltpu


def _cfg_kernel(scale_ref, tscol_ref, q_ref, w1bd_ref, b1col_ref, w2t_ref,
                x_ref, cflat_ref, uflat_ref, out_ref, *, inv_seq):
    s = scale_ref[0]                                   # SMEM scalar cond_scale

    # --- folded CFG conditioning -------------------------------------------
    # blend = (1-s)*uncond + s*cond over the raw [B*S, E] token embeddings.
    blend = (1.0 - s) * uflat_ref[...] + s * cflat_ref[...]          # [B*S, E]
    # Per-batch sequence mean via one tiny MXU dot against the constant 0/1
    # pooling matrix Q [B*C, B*S]; result already row-expanded per channel.
    comb = jnp.dot(q_ref[...], blend,
                   preferred_element_type=jnp.float32,
                   precision=jax.lax.Precision.HIGHEST) * inv_seq    # [B*C, E]
    # proj_col[r] = sum_e comb[r, e] * W2[e, d(r)]  (lane reduce, keepdims)
    proj_col = jnp.sum(comb * w2t_ref[...], axis=-1, keepdims=True)  # [B*C, 1]

    # --- timestep modulation, vectorized over all rows (EUP) ----------------
    tmod = 1.0 + jnp.sin(tscol_ref[...])                             # [B*C, 1]

    # --- block-diagonal 1x1-conv matrix + additive column -------------------
    m = w1bd_ref[...] * tmod                                         # [B*C, B*C]
    addvec = b1col_ref[...] * tmod + proj_col                        # [B*C, 1]

    # --- one MXU contraction + broadcast add + one dense store --------------
    out_ref[...] = jnp.dot(m, x_ref[...],
                           preferred_element_type=jnp.float32,
                           precision=jax.lax.Precision.HIGHEST) + addvec


@jax.jit
def cfg_noise_predictor(x_nchw, timestep, cond, uncond, cond_scale, params):
    """x_nchw: [B,C,H,W] f32; timestep: [B]; cond/uncond: [B,S,E]."""
    B, C, H, W = x_nchw.shape
    HW = H * W
    S, E = cond.shape[1], cond.shape[2]
    BC = B * C

    w1 = params["w1"].astype(jnp.float32)                  # [C, C]
    b1 = params["b1"].reshape(-1).astype(jnp.float32)      # [C]
    w2 = params["w2"].astype(jnp.float32)                  # [E, C]

    # Parameter-only preprocessing (data-independent, trivially small):
    w1bd = jnp.kron(jnp.eye(B, dtype=jnp.float32), w1.T)             # [BC, BC]
    b1_col = jnp.tile(b1, B)[:, None]                                 # [BC, 1]
    w2t_tiled = jnp.tile(w2.T, (B, 1))                                # [BC, E]
    # Pooling matrix: Q[b*C+d, b'*S+s] = 1 iff b == b'.
    q = jnp.kron(jnp.eye(B, dtype=jnp.float32),
                 jnp.ones((C, S), jnp.float32))                       # [BC, B*S]

    # Runtime scalars / per-row timestep column.
    ts_col = jnp.repeat(timestep.astype(jnp.float32).reshape(B), C)[:, None]
    scale = jnp.asarray(cond_scale, jnp.float32).reshape(1)           # SMEM [1]

    # Lane-dense layouts (contiguous reshapes only — no transposes).
    x2 = x_nchw.reshape(BC, HW).astype(jnp.float32)                   # [BC, HW]
    cflat = cond.astype(jnp.float32).reshape(B * S, E)                # [B*S, E]
    uflat = uncond.astype(jnp.float32).reshape(B * S, E)              # [B*S, E]

    kernel = functools.partial(_cfg_kernel, inv_seq=1.0 / S)

    out2 = pl.pallas_call(
        kernel,
        out_shape=jax.ShapeDtypeStruct((BC, HW), jnp.float32),
        in_specs=[
            pl.BlockSpec(memory_space=pltpu.MemorySpace.SMEM),  # cond_scale [1]
            pl.BlockSpec(memory_space=pltpu.MemorySpace.VMEM),  # ts_col [BC,1]
            pl.BlockSpec(memory_space=pltpu.MemorySpace.VMEM),  # Q      [BC,B*S]
            pl.BlockSpec(memory_space=pltpu.MemorySpace.VMEM),  # w1bd   [BC,BC]
            pl.BlockSpec(memory_space=pltpu.MemorySpace.VMEM),  # b1_col [BC,1]
            pl.BlockSpec(memory_space=pltpu.MemorySpace.VMEM),  # w2^T tiled [BC,E]
            pl.BlockSpec(memory_space=pltpu.MemorySpace.VMEM),  # x      [BC,HW]
            pl.BlockSpec(memory_space=pltpu.MemorySpace.VMEM),  # cond   [B*S,E]
            pl.BlockSpec(memory_space=pltpu.MemorySpace.VMEM),  # uncond [B*S,E]
        ],
        out_specs=pl.BlockSpec(memory_space=pltpu.MemorySpace.VMEM),
    )(scale, ts_col, q, w1bd, b1_col, w2t_tiled, x2, cflat, uflat)

    # contiguous reshape back to NCHW (no transpose)
    return out2.reshape(B, C, H, W)


def _reference(x_nchw, timestep, cond, uncond, cond_scale, params):
    """Pure-JAX reference mirroring the PyTorch control flow."""
    B, C, H, W = x_nchw.shape
    w1, b1, w2 = params["w1"], params["b1"], params["w2"]

    def inner_model(x, t, c):
        xl = jnp.transpose(x.reshape(B, C, H * W), (0, 2, 1))      # [B,HW,C]
        h = jnp.einsum("bpc,cd->bpd", xl, w1,
                       precision=jax.lax.Precision.HIGHEST) + b1[None]
        h = h * (1.0 + jnp.sin(t))[:, None, None]
        h = h + jnp.einsum("be,ec->bc", jnp.mean(c, axis=1), w2,
                           precision=jax.lax.Precision.HIGHEST)[:, None, :]
        return jnp.transpose(h, (0, 2, 1)).reshape(B, C, H, W)

    mult = jnp.ones_like(x_nchw)
    cond_pred = (inner_model(x_nchw, timestep, cond) * mult) / (1e-37 + mult)
    uncond_pred = (inner_model(x_nchw, timestep, uncond) * mult) / (1e-37 + mult)
    return uncond_pred + (cond_pred - uncond_pred) * cond_scale


if __name__ == "__main__":
    jax.config.update("jax_default_matmul_precision", "float32")

    B, C, H, W = 2, 4, 16, 16
    S, E = 8, 32
    cond_scale = 7.5

    key = jax.random.PRNGKey(0)
    kx, kt, kc, ku, kw1, kb1, kw2 = jax.random.split(key, 7)

    x = jax.random.normal(kx, (B, C, H, W), dtype=jnp.float32)
    timestep = jax.random.uniform(kt, (B,), dtype=jnp.float32) * 10.0
    cond = jax.random.normal(kc, (B, S, E), dtype=jnp.float32)
    uncond = jax.random.normal(ku, (B, S, E), dtype=jnp.float32)

    # deterministic synthetic inner-model weights
    params = {
        "w1": 0.3 * jax.random.normal(kw1, (C, C), dtype=jnp.float32),
        "b1": 0.1 * jax.random.normal(kb1, (1, C), dtype=jnp.float32),
        "w2": 0.2 * jax.random.normal(kw2, (E, C), dtype=jnp.float32),
    }

    out = cfg_noise_predictor(x, timestep, cond, uncond, cond_scale, params)
    out = jax.block_until_ready(out)

    ref = _reference(x, timestep, cond, uncond, cond_scale, params)
    assert out.shape == (B, C, H, W) and out.dtype == jnp.float32
    assert jnp.allclose(out, ref, atol=1e-4, rtol=1e-4), "mismatch vs reference"

    print("KERNEL_OK")
</pallas_src>

<mosaic_0001>
module attributes {stable_mosaic.version = 11 : i64} {
  func.func @_cfg_kernel(%arg0: memref<1xf32, #tpu.memory_space<smem>>, %arg1: memref<8x1xf32, #tpu.memory_space<vmem>>, %arg2: memref<8x16xf32, #tpu.memory_space<vmem>>, %arg3: memref<8x8xf32, #tpu.memory_space<vmem>>, %arg4: memref<8x1xf32, #tpu.memory_space<vmem>>, %arg5: memref<8x32xf32, #tpu.memory_space<vmem>>, %arg6: memref<8x256xf32, #tpu.memory_space<vmem>>, %arg7: memref<16x32xf32, #tpu.memory_space<vmem>>, %arg8: memref<16x32xf32, #tpu.memory_space<vmem>>, %arg9: memref<8x256xf32, #tpu.memory_space<vmem>>) attributes {dimension_semantics = [], scalar_prefetch = 0 : i64, scratch_operands = 0 : i64, tpu.core_type = #tpu.core_type<tc>} {
    %c0 = arith.constant 0 : index
    %0 = memref.load %arg0[%c0] : memref<1xf32, #tpu.memory_space<smem>>
    %cst = arith.constant 1.000000e+00 : f32
    %1 = arith.subf %cst, %0 : f32
    %c0_0 = arith.constant 0 : index
    %c0_1 = arith.constant 0 : index
    %2 = vector.load %arg8[%c0_0, %c0_1] : memref<16x32xf32, #tpu.memory_space<vmem>>, vector<16x32xf32>
    %3 = vector.broadcast %1 : f32 to vector<16x32xf32>
    %4 = arith.mulf %3, %2 : vector<16x32xf32>
    %c0_2 = arith.constant 0 : index
    %c0_3 = arith.constant 0 : index
    %5 = vector.load %arg7[%c0_2, %c0_3] : memref<16x32xf32, #tpu.memory_space<vmem>>, vector<16x32xf32>
    %6 = vector.broadcast %0 : f32 to vector<16x32xf32>
    %7 = arith.mulf %6, %5 : vector<16x32xf32>
    %8 = arith.addf %4, %7 : vector<16x32xf32>
    %c0_4 = arith.constant 0 : index
    %c0_5 = arith.constant 0 : index
    %9 = vector.load %arg2[%c0_4, %c0_5] : memref<8x16xf32, #tpu.memory_space<vmem>>, vector<8x16xf32>
    %cst_6 = arith.constant dense<0.000000e+00> : vector<8x32xf32>
    %10 = tpu.matmul %9, %8, %cst_6 {dimension_numbers = #tpu.dot_dimension_numbers<[1], [0], [0], [1], [0, 0, 1, 1], [], []>, precision = #tpu.contract_precision<fp32>} : vector<8x16xf32>, vector<16x32xf32>, vector<8x32xf32> -> vector<8x32xf32>
    %cst_7 = arith.constant 1.250000e-01 : f32
    %11 = vector.broadcast %cst_7 : f32 to vector<8x32xf32>
    %12 = arith.mulf %10, %11 : vector<8x32xf32>
    %c0_8 = arith.constant 0 : index
    %c0_9 = arith.constant 0 : index
    %13 = vector.load %arg5[%c0_8, %c0_9] : memref<8x32xf32, #tpu.memory_space<vmem>>, vector<8x32xf32>
    %14 = arith.mulf %12, %13 : vector<8x32xf32>
    %cst_10 = arith.constant dense<0.000000e+00> : vector<8xf32>
    %15 = vector.multi_reduction <add>, %14, %cst_10 [1] : vector<8x32xf32> to vector<8xf32>
    %16 = vector.shape_cast %15 : vector<8xf32> to vector<8x1xf32>
    %c0_11 = arith.constant 0 : index
    %c0_12 = arith.constant 0 : index
    %17 = vector.load %arg1[%c0_11, %c0_12] : memref<8x1xf32, #tpu.memory_space<vmem>>, vector<8x1xf32>
    %18 = math.sin %17 : vector<8x1xf32>
    %cst_13 = arith.constant 1.000000e+00 : f32
    %19 = vector.broadcast %cst_13 : f32 to vector<8x1xf32>
    %20 = arith.addf %19, %18 : vector<8x1xf32>
    %c0_14 = arith.constant 0 : index
    %c0_15 = arith.constant 0 : index
    %21 = vector.load %arg3[%c0_14, %c0_15] : memref<8x8xf32, #tpu.memory_space<vmem>>, vector<8x8xf32>
    %22 = vector.broadcast %20 : vector<8x1xf32> to vector<8x8xf32>
    %23 = arith.mulf %21, %22 : vector<8x8xf32>
    %c0_16 = arith.constant 0 : index
    %c0_17 = arith.constant 0 : index
    %24 = vector.load %arg4[%c0_16, %c0_17] : memref<8x1xf32, #tpu.memory_space<vmem>>, vector<8x1xf32>
    %25 = arith.mulf %24, %20 : vector<8x1xf32>
    %26 = arith.addf %25, %16 : vector<8x1xf32>
    %c0_18 = arith.constant 0 : index
    %c0_19 = arith.constant 0 : index
    %27 = vector.load %arg6[%c0_18, %c0_19] : memref<8x256xf32, #tpu.memory_space<vmem>>, vector<8x256xf32>
    %cst_20 = arith.constant dense<0.000000e+00> : vector<8x256xf32>
    %28 = tpu.matmul %23, %27, %cst_20 {dimension_numbers = #tpu.dot_dimension_numbers<[1], [0], [0], [1], [0, 0, 1, 1], [], []>, precision = #tpu.contract_precision<fp32>} : vector<8x8xf32>, vector<8x256xf32>, vector<8x256xf32> -> vector<8x256xf32>
    %29 = vector.broadcast %26 : vector<8x1xf32> to vector<8x256xf32>
    %30 = arith.addf %28, %29 : vector<8x256xf32>
    %c0_21 = arith.constant 0 : index
    %c0_22 = arith.constant 0 : index
    %31 = vector.load %arg9[%c0_21, %c0_22] : memref<8x256xf32, #tpu.memory_space<vmem>>, vector<8x256xf32>
    tpu.vector_store %arg9[%c0_21, %c0_22], %30 {strides = array<i32>} : memref<8x256xf32, #tpu.memory_space<vmem>>, vector<8x256xf32>,
    return
  }
}

</mosaic_0001>

<llo_original>
// kernel: tile.11
$region0: #{tile.11}
  #allocation0 [shape = 's32[1]{0}', space=sflag, size = 0x4, scoped, tag = 'scoped memory for tile.11']
  %s0 = inlined_call_operand.vmem [shape: f32[4], index: 0, kind: input, shape index: {}]
  %s1 = inlined_call_operand.vmem [shape: f32[2,4], index: 1, kind: output, shape index: {}]
  // Predicated region
  $region2: #{tile.11} parent=0 // pred_check
    _
  $region3: #{tile.11} parent=0 // pred_check_branch
    %3 = sbr.rel (0) target = $region5
  $region4: #{tile.11} parent=0 // pred_region
    _
  $region5: #{tile.11} parent=0 // pred_fallthru
    _
  %v4 = vld [vmem:[%s0] ss:$0 sm:$0xff]
  %5 = vst [vmem:[%s1] sm:$0x3] %v4

// kernel: tile.0
$region0: #{tile.0}
  %s0 = inlined_call_operand.vmem [shape: f32[2,4], index: 0, kind: input, shape index: {}]
  %s1 = inlined_call_operand.vmem [shape: f32[8,1], index: 1, kind: output, shape index: {}]
  $region1: #{tile.0} parent=0
    #allocation0 [shape = 'u8[4096]{0}', space=vmem, size = 0x1000, scoped, tag = 'scoped mem for input reshape']
    %s3 = ssub.s32 4, 1
    %v4 = vld [vmem:[%s0] sm:%s3]
    %5 = vst [vmem:[#allocation0] sm:%s3] %v4
    %v6 = vld [vmem:[#allocation0] sm:$0x3]
    %vm7 = vcmask 7168
    %8 = vst.msk [vmem:[%s1] ss:$4 sm:$0x3] %vm7, %v6
    %v9 = vld [vmem:[#allocation0] sm:$0x3]
    %10 = vrot.lane.b32.xlu0 %v9, 127
    %v11 = vpop.permute.xlu0 %10
    %vm12 = vcmask 7168
    %s13 = scalar_lea.vmem %s1, 1
    %14 = vst.msk [vmem:[%s13] ss:$4 sm:$0x3] %vm12, %v11
    %v15 = vld [vmem:[#allocation0] sm:$0x3]
    %16 = vrot.lane.b32.xlu0 %v15, 126
    %v17 = vpop.permute.xlu0 %16
    %vm18 = vcmask 7168
    %s19 = scalar_lea.vmem %s1, 2
    %20 = vst.msk [vmem:[%s19] ss:$4 sm:$0x3] %vm18, %v17
    %v21 = vld [vmem:[#allocation0] sm:$0x3]
    %22 = vrot.lane.b32.xlu0 %v21, 125
    %v23 = vpop.permute.xlu0 %22
    %vm24 = vcmask 7168
    %s25 = scalar_lea.vmem %s1, 3
    %26 = vst.msk [vmem:[%s25] ss:$4 sm:$0x3] %vm24, %v23

// kernel: cfg_noise_predictor.1
$region0: #{cfg_noise_predictor.1}
  #allocation0 [shape = 'u32[]', space=smem, size = 0x4, offset = 0x4, fixed_abs, tag = 'smem constant byte address 0x4 - core index']
  #allocation1 [shape = 'u32[72,128]{1,0:T(1,128)}', space=vmem, size = 0x9000, scoped, tag = 'internal scratch']
  #allocation2 [shape = 'f32[1]{0:T(128)S(6)}', space=smem, size = 0x200, scoped, tag = 'scoped memory for cfg_noise_predictor.1']
  %s0 = inlined_call_operand.<no memory space> [shape: f32[1], index: 0, kind: input, shape index: {}]
  %s1 = inlined_call_operand.vmem [shape: f32[8,1], index: 1, kind: input, shape index: {}]
  %s2 = inlined_call_operand.vmem [shape: f32[8,16], index: 2, kind: input, shape index: {}]
  %s3 = inlined_call_operand.vmem [shape: f32[8,8], index: 3, kind: input, shape index: {}]
  %s4 = inlined_call_operand.vmem [shape: f32[8,1], index: 4, kind: input, shape index: {}]
  %s5 = inlined_call_operand.vmem [shape: f32[8,32], index: 5, kind: input, shape index: {}]
  %s6 = inlined_call_operand.vmem [shape: f32[8,256], index: 6, kind: input, shape index: {}]
  %s7 = inlined_call_operand.vmem [shape: f32[16,32], index: 7, kind: input, shape index: {}]
  %s8 = inlined_call_operand.vmem [shape: f32[16,32], index: 8, kind: input, shape index: {}]
  %s9 = inlined_call_operand.vmem [shape: f32[8,256], index: 9, kind: output, shape index: {}]
  %s10 = sld [smem:[#allocation0]]
  $region46: #{cfg_noise_predictor.1} parent=0
    _
  %s12 = ssub.s32 1, %s10
  %s13 = scalar_select 0, %s12, %s10
  %14 = sst [smem:[#allocation2]] %s0
  // Predicated region
  $region2: #{cfg_noise_predictor.1} parent=0 // pred_check
    _
  $region3: #{cfg_noise_predictor.1} parent=0 // pred_check_branch
    %16 = sbr.rel (0) target = $region5
  $region4: #{cfg_noise_predictor.1} parent=0 // pred_region
    _
  $region5: #{cfg_noise_predictor.1} parent=0 // pred_fallthru
    _
  // Predicated region
  $region6: #{cfg_noise_predictor.1} parent=0 // pred_check
    _
  $region7: #{cfg_noise_predictor.1} parent=0 // pred_check_branch
    %18 = sbr.rel (0) target = $region9
  $region8: #{cfg_noise_predictor.1} parent=0 // pred_region
    _
  $region9: #{cfg_noise_predictor.1} parent=0 // pred_fallthru
    _
  // Predicated region
  $region10: #{cfg_noise_predictor.1} parent=0 // pred_check
    _
  $region11: #{cfg_noise_predictor.1} parent=0 // pred_check_branch
    %20 = sbr.rel (0) target = $region13
  $region12: #{cfg_noise_predictor.1} parent=0 // pred_region
    _
  $region13: #{cfg_noise_predictor.1} parent=0 // pred_fallthru
    _
  // Predicated region
  $region14: #{cfg_noise_predictor.1} parent=0 // pred_check
    _
  $region15: #{cfg_noise_predictor.1} parent=0 // pred_check_branch
    %22 = sbr.rel (0) target = $region17
  $region16: #{cfg_noise_predictor.1} parent=0 // pred_region
    _
  $region17: #{cfg_noise_predictor.1} parent=0 // pred_fallthru
    _
  // Predicated region
  $region18: #{cfg_noise_predictor.1} parent=0 // pred_check
    _
  $region19: #{cfg_noise_predictor.1} parent=0 // pred_check_branch
    %24 = sbr.rel (0) target = $region21
  $region20: #{cfg_noise_predictor.1} parent=0 // pred_region
    _
  $region21: #{cfg_noise_predictor.1} parent=0 // pred_fallthru
    _
  // Predicated region
  $region22: #{cfg_noise_predictor.1} parent=0 // pred_check
    _
  $region23: #{cfg_noise_predictor.1} parent=0 // pred_check_branch
    %26 = sbr.rel (0) target = $region25
  $region24: #{cfg_noise_predictor.1} parent=0 // pred_region
    _
  $region25: #{cfg_noise_predictor.1} parent=0 // pred_fallthru
    _
  // Predicated region
  $region26: #{cfg_noise_predictor.1} parent=0 // pred_check
    _
  $region27: #{cfg_noise_predictor.1} parent=0 // pred_check_branch
    %28 = sbr.rel (0) target = $region29
  $region28: #{cfg_noise_predictor.1} parent=0 // pred_region
    _
  $region29: #{cfg_noise_predictor.1} parent=0 // pred_fallthru
    _
  // Predicated region
  $region30: #{cfg_noise_predictor.1} parent=0 // pred_check
    _
  $region31: #{cfg_noise_predictor.1} parent=0 // pred_check_branch
    %30 = sbr.rel (0) target = $region33
  $region32: #{cfg_noise_predictor.1} parent=0 // pred_region
    _
  $region33: #{cfg_noise_predictor.1} parent=0 // pred_fallthru
    _
  // Predicated region
  $region34: #{cfg_noise_predictor.1} parent=0 // pred_check
    _
  $region35: #{cfg_noise_predictor.1} parent=0 // pred_check_branch
    %32 = sbr.rel (0) target = $region37
  $region36: #{cfg_noise_predictor.1} parent=0 // pred_region
    _
  $region37: #{cfg_noise_predictor.1} parent=0 // pred_fallthru
    _
  %s33 = sld [smem:[#allocation2]]
  %s34 = ssub.f32 1.0, %s33
  %v35 = vld [vmem:[%s8] sm:$0xff]
  %v36 = vld [vmem:[%s8 + $0x8] sm:$0xff]
  %v37 = vstv %s34
  %v38 = vmul.f32 %v37, %v35
  %v39 = vmul.f32 %v37, %v36
  %v40 = vld [vmem:[%s7] sm:$0xff]
  %v41 = vld [vmem:[%s7 + $0x8] sm:$0xff]
  %v42 = vstv %s33
  %v43 = vmul.f32 %v42, %v40
  %v44 = vmul.f32 %v42, %v41
  %v45 = vadd.f32 %v38, %v43
  %v46 = vadd.f32 %v39, %v44
  %v47 = vld [vmem:[%s2] sm:$0xff]
  %vm48 = vcmask 130048
  %v50 = vsel %vm48, %v47, 0
  %52 = vmatpush.msra.mxu0 0.0
  %53 = vmatpush.msra.mxu0 0.0
  %54 = vmatpush.msra.mxu0 0.0
  %55 = vmatpush.msra.mxu0 0.0
  %56 = vmatpush.msra.mxu0 0.0
  %57 = vmatpush.msra.mxu0 0.0
  %58 = vmatpush.msra.mxu0 0.0
  %59 = vmatpush.msra.mxu0 0.0
  %60 = vmatpush.msra.mxu0 0.0
  %61 = vmatpush.msra.mxu0 0.0
  %62 = vmatpush.msra.mxu0 0.0
  %63 = vmatpush.msra.mxu0 0.0
  %64 = vmatpush.msra.mxu0 0.0
  %65 = vmatpush.msra.mxu0 0.0
  %v66 = vand.u32 %v46, 4294901760
  %67 = vmatpush.msra.mxu0 %v66
  %v68 = vand.u32 %v45, 4294901760
  %69 = vmatpush.msra.mxu0 %v68
  %v70 = vand.u32 %v50, 4294901760
  %v71 = vsub.f32 %v50, %v70
  %v72 = vand.u32 %v71, 4294901760
  %v73 = vsub.f32 %v71, %v72
  %v74 = vand.u32 %v73, 4294901760
  %75 = vmatmul.f32.gmra.mxu0 %v74
  %v76 = vpop.f32.mrf.mxu0
  %v77 = vadd.f32 0.0, %v76
  %78 = vdwg.mxu0
  %79 = vmatpush.msra.mxu0 0.0
  %80 = vmatpush.msra.mxu0 0.0
  %81 = vmatpush.msra.mxu0 0.0
  %82 = vmatpush.msra.mxu0 0.0
  %83 = vmatpush.msra.mxu0 0.0
  %84 = vmatpush.msra.mxu0 0.0
  %85 = vmatpush.msra.mxu0 0.0
  %86 = vmatpush.msra.mxu0 0.0
  %87 = vmatpush.msra.mxu0 0.0
  %88 = vmatpush.msra.mxu0 0.0
  %89 = vmatpush.msra.mxu0 0.0
  %90 = vmatpush.msra.mxu0 0.0
  %91 = vmatpush.msra.mxu0 0.0
  %92 = vmatpush.msra.mxu0 0.0
  %v93 = vand.u32 %v46, 4294901760
  %v94 = vsub.f32 %v46, %v93
  %v95 = vand.u32 %v94, 4294901760
  %v96 = vsub.f32 %v94, %v95
  %v97 = vand.u32 %v96, 4294901760
  %98 = vmatpush.msra.mxu0 %v97
  %v99 = vand.u32 %v45, 4294901760
  %v100 = vsub.f32 %v45, %v99
  %v101 = vand.u32 %v100, 4294901760
  %v102 = vsub.f32 %v100, %v101
  %v103 = vand.u32 %v102, 4294901760
  %104 = vmatpush.msra.mxu0 %v103
  %v105 = vand.u32 %v50, 4294901760
  %106 = vmatmul.f32.gmra.mxu0 %v105
  %v107 = vpop.f32.mrf.mxu0
  %v108 = vadd.f32 %v77, %v107
  %109 = vdwg.mxu0
  %110 = vmatpush.msra.mxu0 0.0
  %111 = vmatpush.msra.mxu0 0.0
  %112 = vmatpush.msra.mxu0 0.0
  %113 = vmatpush.msra.mxu0 0.0
  %114 = vmatpush.msra.mxu0 0.0
  %115 = vmatpush.msra.mxu0 0.0
  %116 = vmatpush.msra.mxu0 0.0
  %117 = vmatpush.msra.mxu0 0.0
  %118 = vmatpush.msra.mxu0 0.0
  %119 = vmatpush.msra.mxu0 0.0
  %120 = vmatpush.msra.mxu0 0.0
  %121 = vmatpush.msra.mxu0 0.0
  %122 = vmatpush.msra.mxu0 0.0
  %123 = vmatpush.msra.mxu0 0.0
  %v124 = vand.u32 %v46, 4294901760
  %v125 = vsub.f32 %v46, %v124
  %126 = vmatpush.msra.mxu0 %v125
  %v127 = vand.u32 %v45, 4294901760
  %v128 = vsub.f32 %v45, %v127
  %129 = vmatpush.msra.mxu0 %v128
  %v130 = vand.u32 %v50, 4294901760
  %v131 = vsub.f32 %v50, %v130
  %132 = vmatmul.f32.gmra.mxu0 %v131
  %v133 = vpop.f32.mrf.mxu0
  %v134 = vadd.f32 %v108, %v133
  %135 = vdwg.mxu0
  %136 = vmatpush.msra.mxu0 0.0
  %137 = vmatpush.msra.mxu0 0.0
  %138 = vmatpush.msra.mxu0 0.0
  %139 = vmatpush.msra.mxu0 0.0
  %140 = vmatpush.msra.mxu0 0.0
  %141 = vmatpush.msra.mxu0 0.0
  %142 = vmatpush.msra.mxu0 0.0
  %143 = vmatpush.msra.mxu0 0.0
  %144 = vmatpush.msra.mxu0 0.0
  %145 = vmatpush.msra.mxu0 0.0
  %146 = vmatpush.msra.mxu0 0.0
  %147 = vmatpush.msra.mxu0 0.0
  %148 = vmatpush.msra.mxu0 0.0
  %149 = vmatpush.msra.mxu0 0.0
  %v150 = vand.u32 %v46, 4294901760
  %151 = vmatpush.msra.mxu0 %v150
  %v152 = vand.u32 %v45, 4294901760
  %153 = vmatpush.msra.mxu0 %v152
  %v154 = vand.u32 %v50, 4294901760
  %v155 = vsub.f32 %v50, %v154
  %v156 = vand.u32 %v155, 4294901760
  %157 = vmatmul.f32.gmra.mxu0 %v156
  %v158 = vpop.f32.mrf.mxu0
  %v159 = vadd.f32 %v134, %v158
  %160 = vdwg.mxu0
  %161 = vmatpush.msra.mxu0 0.0
  %162 = vmatpush.msra.mxu0 0.0
  %163 = vmatpush.msra.mxu0 0.0
  %164 = vmatpush.msra.mxu0 0.0
  %165 = vmatpush.msra.mxu0 0.0
  %166 = vmatpush.msra.mxu0 0.0
  %167 = vmatpush.msra.mxu0 0.0
  %168 = vmatpush.msra.mxu0 0.0
  %169 = vmatpush.msra.mxu0 0.0
  %170 = vmatpush.msra.mxu0 0.0
  %171 = vmatpush.msra.mxu0 0.0
  %172 = vmatpush.msra.mxu0 0.0
  %173 = vmatpush.msra.mxu0 0.0
  %174 = vmatpush.msra.mxu0 0.0
  %v175 = vand.u32 %v46, 4294901760
  %v176 = vsub.f32 %v46, %v175
  %v177 = vand.u32 %v176, 4294901760
  %178 = vmatpush.msra.mxu0 %v177
  %v179 = vand.u32 %v45, 4294901760
  %v180 = vsub.f32 %v45, %v179
  %v181 = vand.u32 %v180, 4294901760
  %182 = vmatpush.msra.mxu0 %v181
  %v183 = vand.u32 %v50, 4294901760
  %184 = vmatmul.f32.gmra.mxu0 %v183
  %v185 = vpop.f32.mrf.mxu0
  %v186 = vadd.f32 %v159, %v185
  %187 = vdwg.mxu0
  %188 = vmatpush.msra.mxu0 0.0
  %189 = vmatpush.msra.mxu0 0.0
  %190 = vmatpush.msra.mxu0 0.0
  %191 = vmatpush.msra.mxu0 0.0
  %192 = vmatpush.msra.mxu0 0.0
  %193 = vmatpush.msra.mxu0 0.0
  %194 = vmatpush.msra.mxu0 0.0
  %195 = vmatpush.msra.mxu0 0.0
  %196 = vmatpush.msra.mxu0 0.0
  %197 = vmatpush.msra.mxu0 0.0
  %198 = vmatpush.msra.mxu0 0.0
  %199 = vmatpush.msra.mxu0 0.0
  %200 = vmatpush.msra.mxu0 0.0
  %201 = vmatpush.msra.mxu0 0.0
  %v202 = vand.u32 %v46, 4294901760
  %203 = vmatpush.msra.mxu0 %v202
  %v204 = vand.u32 %v45, 4294901760
  %205 = vmatpush.msra.mxu0 %v204
  %v206 = vand.u32 %v50, 4294901760
  %207 = vmatmul.f32.gmra.mxu0 %v206
  %v208 = vpop.f32.mrf.mxu0
  %v209 = vadd.f32 %v186, %v208
  %210 = vdwg.mxu0
  %v211 = vmul.f32 %v209, 0.125
  %v212 = vld [vmem:[%s5] sm:$0xff]
  %v213 = vmul.f32 %v211, %v212
  %vm214 = vcmask 261120
  %v215 = vsel %vm214, %v213, 0.0
  %216 = vadd.xlane.f32.xlu0 %v215
  %v217 = vpop.xlane.xlu0 %216
  %v218 = vld [vmem:[%s1] sm:$0xff]
  %v219 = vand.u32 2147483647, %v218
  %vm220 = vcmp.le.f32.partialorder %v219, 0.7853982
  %vm221 = vcmp.lt.s32.totalorder %v218, 0
  %v222 = vand.u32 %v218, 2139095040
  %v223 = vshrl.u32 %v222, 23
  %v224 = vsub.s32 %v223, 127
  %v225 = vand.u32 2147483647, %v218
  %v226 = vand.u32 %v225, 8388607
  %v227 = vor.u32 %v226, 8388608
  %v228 = vsub.s32 0, %v227
  %v229 = vadd.s32 %v224, 1
  %vm230 = vcmp.gt.s32.totalorder %v229, 0
  %v231 = vsel %vm230, %v229, 0
  %v232 = vshrl.u32 %v231, 5
  %v233 = vand.u32 %v231, 31
  %v234 = vsub.s32 32, %v233
  %v235 = vshrl.u32 683565275, %v234
  %v236 = vshll.u32 683565275, %v233
  %v237 = vshrl.u32 2475754826, %v234
  %v238 = vor.u32 %v236, %v237
  %v239 = vshll.u32 2475754826, %v233
  %v240 = vshrl.u32 2131351028, %v234
  %v241 = vor.u32 %v239, %v240
  %v242 = vshll.u32 2131351028, %v233
  %v243 = vshrl.u32 2102212464, %v234
  %v244 = vor.u32 %v242, %v243
  %v245 = vshll.u32 2102212464, %v233
  %v246 = vshrl.u32 920167782, %v234
  %v247 = vor.u32 %v245, %v246
  %v248 = vshll.u32 920167782, %v233
  %v249 = vshrl.u32 1326507024, %v234
  %v250 = vor.u32 %v248, %v249
  %vm251 = vcmp.lt.s32.totalorder %v232, 1
  %vm252 = vcmp.lt.s32.totalorder %v232, 2
  %vm253 = vcmp.lt.s32.totalorder %v232, 3
  %vm254 = vcmp.lt.s32.totalorder %v232, 4
  %v255 = vsel %vm251, %v235, %v238
  %v256 = vsel %vm254, %v244, 2102212464
  %v257 = vsel %vm253, %v241, %v256
  %v258 = vsel %vm252, %v255, %v257
  %v259 = vsel %vm251, %v238, %v241
  %v260 = vsel %vm254, %v247, 920167782
  %v261 = vsel %vm253, %v244, %v260
  %v262 = vsel %vm252, %v259, %v261
  %v263 = vsel %vm251, %v241, %v244
  %v264 = vsel %vm254, %v250, 1326507024
  %v265 = vsel %vm253, %v247, %v264
  %v266 = vsel %vm252, %v263, %v265
  %v267 = vshll.u32 %v227, 8
  %v268 = vand.u32 %v267, 65535
  %v269 = vshrl.u32 %v267, 16
  %v270 = vand.u32 %v266, 65535
  %v271 = vshrl.u32 %v266, 16
  %v272 = vmul.u32 %v268, %v270
  %v273 = vmul.u32 %v268, %v271
  %v274 = vmul.u32 %v269, %v270
  %v275 = vmul.u32 %v269, %v271
  %v276 = vshll.u32 %v273, 16
  %v277 = vshrl.u32 %v273, 16
  %v278 = vshll.u32 %v274, 16
  %v279 = vshrl.u32 %v274, 16
  %vm280 = vc.u32 %v272, %v276
  %v281 = vsel %vm280, 1, 0
  %v282 = vadd.s32 %v272, %v276
  %v283 = vadd.s32 %v275, %v281
  %vm284 = vc.u32 %v282, %v278
  %v285 = vsel %vm284, 1, 0
  %v286 = vadd.s32 %v282, %v278
  %v287 = vadd.s32 %v283, %v285
  %v288 = vadd.s32 %v287, %v277
  %v289 = vadd.s32 %v288, %v279
  %v290 = vand.u32 %v267, 65535
  %v291 = vshrl.u32 %v267, 16
  %v292 = vand.u32 %v262, 65535
  %v293 = vshrl.u32 %v262, 16
  %v294 = vmul.u32 %v290, %v292
  %v295 = vmul.u32 %v290, %v293
  %v296 = vmul.u32 %v291, %v292
  %v297 = vmul.u32 %v291, %v293
  %v298 = vshll.u32 %v295, 16
  %v299 = vshrl.u32 %v295, 16
  %v300 = vshll.u32 %v296, 16
  %v301 = vshrl.u32 %v296, 16
  %vm302 = vc.u32 %v294, %v298
  %v303 = vsel %vm302, 1, 0
  %v304 = vadd.s32 %v294, %v298
  %v305 = vadd.s32 %v297, %v303
  %vm306 = vc.u32 %v304, %v300
  %v307 = vsel %vm306, 1, 0
  %v308 = vadd.s32 %v304, %v300
  %v309 = vadd.s32 %v305, %v307
  %v310 = vadd.s32 %v309, %v299
  %v311 = vadd.s32 %v310, %v301
  %v312 = vmul.u32 %v267, %v258
  %v313 = vadd.s32 %v289, %v308
  %vm314 = vc.u32 %v289, %v308
  %v315 = vadd.s32 %v311, 1
  %v316 = vsel %vm314, %v315, %v311
  %v317 = vadd.s32 %v312, %v316
  %v318 = vadd.s32 %v317, 536870912
  %v319 = vshrl.u32 %v318, 30
  %v320 = vshll.u32 %v319, 30
  %v321 = vsub.s32 %v317, %v320
  %vm322 = vcmp.lt.s32.totalorder %v321, 0
  %v323 = vsub.s32 0, %v321
  %v324 = vsel %vm322, %v323, %v321
  %v325 = vclz %v324
  %v326 = vsub.s32 %v325, 2
  %vm327 = vcmp.gt.s32.totalorder 0, %v326
  %v328 = vsel %vm327, 0, %v326
  %v329 = vsub.s32 32, %v328
  %v330 = vshll.u32 %v321, %v328
  %v331 = vshrl.u32 %v313, %v329
  %v332 = vor.u32 %v330, %v331
  %v333 = vsub.s32 4294967266, %v328
  %v334 = vadd.s32 %v333, 127
  %v335 = vshll.u32 %v334, 23
  %v336 = vor.u32 4788187, %v335
  %v337 = vand.u32 2147483647, %v336
  %v339 = vcvt.s32.f32 %v332
  %v340 = vmul.f32 %v339, %v337
  %v341 = vxor.u32 %v340, 2147483648
  %v342 = vsel %vm221, %v341, %v340
  %v343 = vsub.s32 4, %v319
  %v344 = vsel %vm221, %v343, %v319
  %v345 = vsel %vm220, %v218, %v342
  %v346 = vsel %vm220, 0, %v344
  %v347 = vmul.f32 %v345, %v345
  %v348 = vmul.f32 %v347, -0.001358992
  %v349 = vadd.f32 %v348, 0.041655596
  %v350 = vmul.f32 %v347, %v349
  %v351 = vadd.f32 %v350, -0.4999988
  %v352 = vmul.f32 %v347, %v351
  %v353 = vadd.f32 1.0, %v352
  %v354 = vmul.f32 %v345, %v345
  %v355 = vmul.f32 %v354, -0.00019511016
  %v356 = vadd.f32 %v355, 0.008332121
  %v357 = vmul.f32 %v354, %v356
  %v358 = vadd.f32 %v357, -0.16666654
  %v359 = vmul.f32 %v354, %v358
  %v360 = vadd.f32 %v359, 1.0
  %v361 = vmul.f32 %v360, %v345
  %vm362 = vweird.f32 %v218
  %v363 = vadd.s32 %v346, 3
  %v364 = vand.u32 %v363, 3
  %vm365 = vcmp.lt.s32.totalorder %v364, 2
  %vm366 = vcmp.eq.s32.totalorder %v364, 0
  %v367 = vxor.u32 %v361, 2147483648
  %v368 = vsel %vm366, %v353, %v367
  %vm369 = vcmp.eq.s32.totalorder %v364, 2
  %v370 = vxor.u32 %v353, 2147483648
  %v371 = vsel %vm369, %v370, %v361
  %v372 = vsel %vm365, %v368, %v371
  %v373 = vsel %vm362, nan, %v372
  %v374 = vadd.f32 %v373, 1.0
  %v375 = vld [vmem:[%s3] sm:$0xff]
  %377 = vset.pattern.permute.xlu0 0
  %378 = vperm.xlu0 %377, %v374
  %v379 = vpop.permute.xlu0 %378
  %v381 = vmul.f32 %v375, %v379
  %v382 = vld [vmem:[%s4] sm:$0xff]
  %v383 = vmul.f32 %v382, %v374
  %v384 = vadd.f32 %v383, %v217
  %v385 = vld [vmem:[%s6] sm:$0xff]
  %v386 = vld [vmem:[%s6 + $0x8] sm:$0xff]
  %388 = vset.pattern.permute.xlu0 0
  %389 = vperm.xlu0 %388, %v384
  %v390 = vpop.permute.xlu0 %389
  %vm392 = vcmask 64512
  %v394 = vsel %vm392, %v381, 0
  %396 = vmatpush.msra.mxu0 0.0
  %397 = vmatpush.msra.mxu0 0.0
  %398 = vmatpush.msra.mxu0 0.0
  %399 = vmatpush.msra.mxu0 0.0
  %400 = vmatpush.msra.mxu0 0.0
  %401 = vmatpush.msra.mxu0 0.0
  %402 = vmatpush.msra.mxu0 0.0
  %403 = vmatpush.msra.mxu0 0.0
  %404 = vmatpush.msra.mxu0 0.0
  %405 = vmatpush.msra.mxu0 0.0
  %406 = vmatpush.msra.mxu0 0.0
  %407 = vmatpush.msra.mxu0 0.0
  %408 = vmatpush.msra.mxu0 0.0
  %409 = vmatpush.msra.mxu0 0.0
  %410 = vmatpush.msra.mxu0 0.0
  %v411 = vand.u32 %v385, 4294901760
  %412 = vmatpush.msra.mxu0 %v411
  %v413 = vand.u32 %v394, 4294901760
  %v414 = vsub.f32 %v394, %v413
  %v415 = vand.u32 %v414, 4294901760
  %v416 = vsub.f32 %v414, %v415
  %v417 = vand.u32 %v416, 4294901760
  %418 = vmatmul.f32.gmra.mxu0 %v417
  %v419 = vpop.f32.mrf.mxu0
  %v420 = vadd.f32 %v390, %v419
  %421 = vdwg.mxu0
  %422 = vmatpush.msra.mxu0 0.0
  %423 = vmatpush.msra.mxu0 0.0
  %424 = vmatpush.msra.mxu0 0.0
  %425 = vmatpush.msra.mxu0 0.0
  %426 = vmatpush.msra.mxu0 0.0
  %427 = vmatpush.msra.mxu0 0.0
  %428 = vmatpush.msra.mxu0 0.0
  %429 = vmatpush.msra.mxu0 0.0
  %430 = vmatpush.msra.mxu0 0.0
  %431 = vmatpush.msra.mxu0 0.0
  %432 = vmatpush.msra.mxu0 0.0
  %433 = vmatpush.msra.mxu0 0.0
  %434 = vmatpush.msra.mxu0 0.0
  %435 = vmatpush.msra.mxu0 0.0
  %436 = vmatpush.msra.mxu0 0.0
  %v437 = vand.u32 %v385, 4294901760
  %v438 = vsub.f32 %v385, %v437
  %v439 = vand.u32 %v438, 4294901760
  %v440 = vsub.f32 %v438, %v439
  %v441 = vand.u32 %v440, 4294901760
  %442 = vmatpush.msra.mxu0 %v441
  %v443 = vand.u32 %v394, 4294901760
  %444 = vmatmul.f32.gmra.mxu0 %v443
  %v445 = vpop.f32.mrf.mxu0
  %v446 = vadd.f32 %v420, %v445
  %447 = vdwg.mxu0
  %448 = vmatpush.msra.mxu0 0.0
  %449 = vmatpush.msra.mxu0 0.0
  %450 = vmatpush.msra.mxu0 0.0
  %451 = vmatpush.msra.mxu0 0.0
  %452 = vmatpush.msra.mxu0 0.0
  %453 = vmatpush.msra.mxu0 0.0
  %454 = vmatpush.msra.mxu0 0.0
  %455 = vmatpush.msra.mxu0 0.0
  %456 = vmatpush.msra.mxu0 0.0
  %457 = vmatpush.msra.mxu0 0.0
  %458 = vmatpush.msra.mxu0 0.0
  %459 = vmatpush.msra.mxu0 0.0
  %460 = vmatpush.msra.mxu0 0.0
  %461 = vmatpush.msra.mxu0 0.0
  %462 = vmatpush.msra.mxu0 0.0
  %v463 = vand.u32 %v385, 4294901760
  %v464 = vsub.f32 %v385, %v463
  %465 = vmatpush.msra.mxu0 %v464
  %v466 = vand.u32 %v394, 4294901760
  %v467 = vsub.f32 %v394, %v466
  %468 = vmatmul.f32.gmra.mxu0 %v467
  %v469 = vpop.f32.mrf.mxu0
  %v470 = vadd.f32 %v446, %v469
  %471 = vdwg.mxu0
  %472 = vmatpush.msra.mxu0 0.0
  %473 = vmatpush.msra.mxu0 0.0
  %474 = vmatpush.msra.mxu0 0.0
  %475 = vmatpush.msra.mxu0 0.0
  %476 = vmatpush.msra.mxu0 0.0
  %477 = vmatpush.msra.mxu0 0.0
  %478 = vmatpush.msra.mxu0 0.0
  %479 = vmatpush.msra.mxu0 0.0
  %480 = vmatpush.msra.mxu0 0.0
  %481 = vmatpush.msra.mxu0 0.0
  %482 = vmatpush.msra.mxu0 0.0
  %483 = vmatpush.msra.mxu0 0.0
  %484 = vmatpush.msra.mxu0 0.0
  %485 = vmatpush.msra.mxu0 0.0
  %486 = vmatpush.msra.mxu0 0.0
  %v487 = vand.u32 %v385, 4294901760
  %488 = vmatpush.msra.mxu0 %v487
  %v489 = vand.u32 %v394, 4294901760
  %v490 = vsub.f32 %v394, %v489
  %v491 = vand.u32 %v490, 4294901760
  %492 = vmatmul.f32.gmra.mxu0 %v491
  %v493 = vpop.f32.mrf.mxu0
  %v494 = vadd.f32 %v470, %v493
  %495 = vdwg.mxu0
  %496 = vmatpush.msra.mxu0 0.0
  %497 = vmatpush.msra.mxu0 0.0
  %498 = vmatpush.msra.mxu0 0.0
  %499 = vmatpush.msra.mxu0 0.0
  %500 = vmatpush.msra.mxu0 0.0
  %501 = vmatpush.msra.mxu0 0.0
  %502 = vmatpush.msra.mxu0 0.0
  %503 = vmatpush.msra.mxu0 0.0
  %504 = vmatpush.msra.mxu0 0.0
  %505 = vmatpush.msra.mxu0 0.0
  %506 = vmatpush.msra.mxu0 0.0
  %507 = vmatpush.msra.mxu0 0.0
  %508 = vmatpush.msra.mxu0 0.0
  %509 = vmatpush.msra.mxu0 0.0
  %510 = vmatpush.msra.mxu0 0.0
  %v511 = vand.u32 %v385, 4294901760
  %v512 = vsub.f32 %v385, %v511
  %v513 = vand.u32 %v512, 4294901760
  %514 = vmatpush.msra.mxu0 %v513
  %v515 = vand.u32 %v394, 4294901760
  %516 = vmatmul.f32.gmra.mxu0 %v515
  %v517 = vpop.f32.mrf.mxu0
  %v518 = vadd.f32 %v494, %v517
  %519 = vdwg.mxu0
  %520 = vmatpush.msra.mxu0 0.0
  %521 = vmatpush.msra.mxu0 0.0
  %522 = vmatpush.msra.mxu0 0.0
  %523 = vmatpush.msra.mxu0 0.0
  %524 = vmatpush.msra.mxu0 0.0
  %525 = vmatpush.msra.mxu0 0.0
  %526 = vmatpush.msra.mxu0 0.0
  %527 = vmatpush.msra.mxu0 0.0
  %528 = vmatpush.msra.mxu0 0.0
  %529 = vmatpush.msra.mxu0 0.0
  %530 = vmatpush.msra.mxu0 0.0
  %531 = vmatpush.msra.mxu0 0.0
  %532 = vmatpush.msra.mxu0 0.0
  %533 = vmatpush.msra.mxu0 0.0
  %534 = vmatpush.msra.mxu0 0.0
  %v535 = vand.u32 %v385, 4294901760
  %536 = vmatpush.msra.mxu0 %v535
  %v537 = vand.u32 %v394, 4294901760
  %538 = vmatmul.f32.gmra.mxu0 %v537
  %v539 = vpop.f32.mrf.mxu0
  %v540 = vadd.f32 %v518, %v539
  %541 = vdwg.mxu0
  %542 = vmatpush.msra.mxu0 0.0
  %543 = vmatpush.msra.mxu0 0.0
  %544 = vmatpush.msra.mxu0 0.0
  %545 = vmatpush.msra.mxu0 0.0
  %546 = vmatpush.msra.mxu0 0.0
  %547 = vmatpush.msra.mxu0 0.0
  %548 = vmatpush.msra.mxu0 0.0
  %549 = vmatpush.msra.mxu0 0.0
  %550 = vmatpush.msra.mxu0 0.0
  %551 = vmatpush.msra.mxu0 0.0
  %552 = vmatpush.msra.mxu0 0.0
  %553 = vmatpush.msra.mxu0 0.0
  %554 = vmatpush.msra.mxu0 0.0
  %555 = vmatpush.msra.mxu0 0.0
  %556 = vmatpush.msra.mxu0 0.0
  %v557 = vand.u32 %v386, 4294901760
  %558 = vmatpush.msra.mxu0 %v557
  %v559 = vand.u32 %v394, 4294901760
  %v560 = vsub.f32 %v394, %v559
  %v561 = vand.u32 %v560, 4294901760
  %v562 = vsub.f32 %v560, %v561
  %v563 = vand.u32 %v562, 4294901760
  %564 = vmatmul.f32.gmra.mxu0 %v563
  %v565 = vpop.f32.mrf.mxu0
  %v566 = vadd.f32 %v390, %v565
  %567 = vdwg.mxu0
  %568 = vmatpush.msra.mxu0 0.0
  %569 = vmatpush.msra.mxu0 0.0
  %570 = vmatpush.msra.mxu0 0.0
  %571 = vmatpush.msra.mxu0 0.0
  %572 = vmatpush.msra.mxu0 0.0
  %573 = vmatpush.msra.mxu0 0.0
  %574 = vmatpush.msra.mxu0 0.0
  %575 = vmatpush.msra.mxu0 0.0
  %576 = vmatpush.msra.mxu0 0.0
  %577 = vmatpush.msra.mxu0 0.0
  %578 = vmatpush.msra.mxu0 0.0
  %579 = vmatpush.msra.mxu0 0.0
  %580 = vmatpush.msra.mxu0 0.0
  %581 = vmatpush.msra.mxu0 0.0
  %582 = vmatpush.msra.mxu0 0.0
  %v583 = vand.u32 %v386, 4294901760
  %v584 = vsub.f32 %v386, %v583
  %v585 = vand.u32 %v584, 4294901760
  %v586 = vsub.f32 %v584, %v585
  %v587 = vand.u32 %v586, 4294901760
  %588 = vmatpush.msra.mxu0 %v587
  %v589 = vand.u32 %v394, 4294901760
  %590 = vmatmul.f32.gmra.mxu0 %v589
  %v591 = vpop.f32.mrf.mxu0
  %v592 = vadd.f32 %v566, %v591
  %593 = vdwg.mxu0
  %594 = vmatpush.msra.mxu0 0.0
  %595 = vmatpush.msra.mxu0 0.0
  %596 = vmatpush.msra.mxu0 0.0
  %597 = vmatpush.msra.mxu0 0.0
  %598 = vmatpush.msra.mxu0 0.0
  %599 = vmatpush.msra.mxu0 0.0
  %600 = vmatpush.msra.mxu0 0.0
  %601 = vmatpush.msra.mxu0 0.0
  %602 = vmatpush.msra.mxu0 0.0
  %603 = vmatpush.msra.mxu0 0.0
  %604 = vmatpush.msra.mxu0 0.0
  %605 = vmatpush.msra.mxu0 0.0
  %606 = vmatpush.msra.mxu0 0.0
  %607 = vmatpush.msra.mxu0 0.0
  %608 = vmatpush.msra.mxu0 0.0
  %v609 = vand.u32 %v386, 4294901760
  %v610 = vsub.f32 %v386, %v609
  %611 = vmatpush.msra.mxu0 %v610
  %v612 = vand.u32 %v394, 4294901760
  %v613 = vsub.f32 %v394, %v612
  %614 = vmatmul.f32.gmra.mxu0 %v613
  %v615 = vpop.f32.mrf.mxu0
  %v616 = vadd.f32 %v592, %v615
  %617 = vdwg.mxu0
  %618 = vmatpush.msra.mxu0 0.0
  %619 = vmatpush.msra.mxu0 0.0
  %620 = vmatpush.msra.mxu0 0.0
  %621 = vmatpush.msra.mxu0 0.0
  %622 = vmatpush.msra.mxu0 0.0
  %623 = vmatpush.msra.mxu0 0.0
  %624 = vmatpush.msra.mxu0 0.0
  %625 = vmatpush.msra.mxu0 0.0
  %626 = vmatpush.msra.mxu0 0.0
  %627 = vmatpush.msra.mxu0 0.0
  %628 = vmatpush.msra.mxu0 0.0
  %629 = vmatpush.msra.mxu0 0.0
  %630 = vmatpush.msra.mxu0 0.0
  %631 = vmatpush.msra.mxu0 0.0
  %632 = vmatpush.msra.mxu0 0.0
  %v633 = vand.u32 %v386, 4294901760
  %634 = vmatpush.msra.mxu0 %v633
  %v635 = vand.u32 %v394, 4294901760
  %v636 = vsub.f32 %v394, %v635
  %v637 = vand.u32 %v636, 4294901760
  %638 = vmatmul.f32.gmra.mxu0 %v637
  %v639 = vpop.f32.mrf.mxu0
  %v640 = vadd.f32 %v616, %v639
  %641 = vdwg.mxu0
  %642 = vmatpush.msra.mxu0 0.0
  %643 = vmatpush.msra.mxu0 0.0
  %644 = vmatpush.msra.mxu0 0.0
  %645 = vmatpush.msra.mxu0 0.0
  %646 = vmatpush.msra.mxu0 0.0
  %647 = vmatpush.msra.mxu0 0.0
  %648 = vmatpush.msra.mxu0 0.0
  %649 = vmatpush.msra.mxu0 0.0
  %650 = vmatpush.msra.mxu0 0.0
  %651 = vmatpush.msra.mxu0 0.0
  %652 = vmatpush.msra.mxu0 0.0
  %653 = vmatpush.msra.mxu0 0.0
  %654 = vmatpush.msra.mxu0 0.0
  %655 = vmatpush.msra.mxu0 0.0
  %656 = vmatpush.msra.mxu0 0.0
  %v657 = vand.u32 %v386, 4294901760
  %v658 = vsub.f32 %v386, %v657
  %v659 = vand.u32 %v658, 4294901760
  %660 = vmatpush.msra.mxu0 %v659
  %v661 = vand.u32 %v394, 4294901760
  %662 = vmatmul.f32.gmra.mxu0 %v661
  %v663 = vpop.f32.mrf.mxu0
  %v664 = vadd.f32 %v640, %v663
  %665 = vdwg.mxu0
  %666 = vmatpush.msra.mxu0 0.0
  %667 = vmatpush.msra.mxu0 0.0
  %668 = vmatpush.msra.mxu0 0.0
  %669 = vmatpush.msra.mxu0 0.0
  %670 = vmatpush.msra.mxu0 0.0
  %671 = vmatpush.msra.mxu0 0.0
  %672 = vmatpush.msra.mxu0 0.0
  %673 = vmatpush.msra.mxu0 0.0
  %674 = vmatpush.msra.mxu0 0.0
  %675 = vmatpush.msra.mxu0 0.0
  %676 = vmatpush.msra.mxu0 0.0
  %677 = vmatpush.msra.mxu0 0.0
  %678 = vmatpush.msra.mxu0 0.0
  %679 = vmatpush.msra.mxu0 0.0
  %680 = vmatpush.msra.mxu0 0.0
  %v681 = vand.u32 %v386, 4294901760
  %682 = vmatpush.msra.mxu0 %v681
  %v683 = vand.u32 %v394, 4294901760
  %684 = vmatmul.f32.gmra.mxu0 %v683
  %v685 = vpop.f32.mrf.mxu0
  %v686 = vadd.f32 %v664, %v685
  %687 = vdwg.mxu0
  %688 = vst [vmem:[%s9] sm:$0xff] %v540
  %689 = vst [vmem:[%s9 + $0x8] sm:$0xff] %v686
  // Predicated region
  $region38: #{cfg_noise_predictor.1} parent=0 // pred_check
    _
  $region39: #{cfg_noise_predictor.1} parent=0 // pred_check_branch
    %691 = sbr.rel (0) target = $region41
  $region40: #{cfg_noise_predictor.1} parent=0 // pred_region
    _
  $region41: #{cfg_noise_predictor.1} parent=0 // pred_fallthru
    _
  // Predicated region
  $region42: #{cfg_noise_predictor.1} parent=0 // pred_check
    _
  $region43: #{cfg_noise_predictor.1} parent=0 // pred_check_branch
    %693 = sbr.rel (0) target = $region45
  $region44: #{cfg_noise_predictor.1} parent=0 // pred_region
    _
  $region45: #{cfg_noise_predictor.1} parent=0 // pred_fallthru
    _

</llo_original>
